<compile_context>
chip_gen: v6e
topology: v6e:2x2x1
jax: 0.10.0
libtpu: 0.0.40
codegen_flags: <defaults>
</compile_context>

<pallas_src>
import jax
import jax.numpy as jnp
from jax.experimental import pallas as pl
from jax.experimental.pallas import tpu as pltpu

HIDDEN1 = 128   # padded up from 64 (lane-dense h1, full 128-deep W2 contraction)
HIDDEN2 = 128
NUM_HEADS = 2   # fused [mean, sigma]


def _actor_kernel(ab_ref, bh_ref, x_ref, w1_ref, b1_ref, w2_ref, b2_ref,
                  wh_ref, out_ref):
    x = x_ref[...]                                   # [TM, D_in]  f32
    w1 = w1_ref[...]                                 # [D_in, 128] f32
    d_in = w1.shape[0]                               # static (3 for Pendulum)

    # ---- layer 1 on the VPU: K = d_in is tiny, so an MXU matmul would cost
    #      the same ~TM/8 pushes as the full 128-deep layer.  Broadcast
    #      mul-adds over [TM, 128] use the idle VALU slots instead. ----
    h1 = b1_ref[...]                                 # [1, 128] -> broadcasts up
    for d in range(d_in):                            # unrolled at trace time
        h1 = h1 + x[:, d:d + 1] * w1[d:d + 1, :]
    h1 = jnp.maximum(h1, 0.0)                        # [TM, 128] f32 (cols 64..127 are 0)

    # ---- layer 2: the only MXU matmul, in bf16 with f32 accumulation ----
    h2 = jnp.dot(h1.astype(jnp.bfloat16), w2_ref[...],
                 preferred_element_type=jnp.float32) + b2_ref[...]
    h2 = jnp.maximum(h2, 0.0)                        # [TM, 128] f32

    # ---- fused heads (N=2) off the MXU: VPU multiply + XLU lane-reduce ----
    wh = wh_ref[...]                                 # [2, 128] f32 (row0=mu, row1=sigma)
    z_mu = jnp.sum(h2 * wh[0:1, :], axis=1, keepdims=True) + bh_ref[0, 0]  # [TM, 1]
    z_sg = jnp.sum(h2 * wh[1:2, :], axis=1, keepdims=True) + bh_ref[0, 1]  # [TM, 1]

    bound = ab_ref[0, 0]                             # SMEM scalar
    mean = jnp.tanh(z_mu) * bound
    # numerically stable softplus: max(z,0) + log(1 + exp(-|z|))
    sigma = jnp.maximum(z_sg, 0.0) + jnp.log(1.0 + jnp.exp(-jnp.abs(z_sg)))

    col = jax.lax.broadcasted_iota(jnp.int32, (x.shape[0], NUM_HEADS), 1)
    out_ref[...] = jnp.where(col == 0, mean, sigma)  # single [TM, 2] store


def pack_params(params):
    """Pad hidden1 64->128, cast W2 to bf16, transpose/fuse the heads.

    Call once per parameter update, not per forward pass.
    """
    w1, b1 = params["w1"], params["b1"]          # [D_in, 64], [1, 64]
    w2, b2 = params["w2"], params["b2"]          # [64, 128],  [1, 128]
    d_in, h1_real = w1.shape
    w1p = jnp.zeros((d_in, HIDDEN1), jnp.float32).at[:, :h1_real].set(w1)
    b1p = jnp.zeros((1, HIDDEN1), jnp.float32).at[:, :h1_real].set(b1)
    w2p = jnp.zeros((HIDDEN1, HIDDEN2), jnp.float32).at[:h1_real, :].set(w2)
    w2p = w2p.astype(jnp.bfloat16)                                   # MXU operand
    wh_t = jnp.concatenate([params["wmu"], params["ws"]], axis=1).T  # [2, 128]
    bh = jnp.concatenate([params["bmu"], params["bs"]], axis=1)      # [1, 2]
    return dict(w1=w1p, b1=b1p, w2=w2p, b2=b2.astype(jnp.float32),
                wh=wh_t, bh=bh.astype(jnp.float32))


def _round_up(x, m):
    return ((x + m - 1) // m) * m


def actor_forward(obs, packed, action_bound, *, block_m=1024):
    """obs: [B, D_in] float32. Returns (mean [B, 1], sigma [B, 1])."""
    B, d_in = obs.shape
    block_m = max(8, (block_m // 8) * 8)

    # Batch tile: multiple of 8 sublanes.  Cap at ceil(B/2) (rounded up to 8)
    # so any B > 8 yields >= 2 grid steps -> the "parallel" axis shards across
    # both TensorCores on v7x; larger block_m amortizes per-step overhead.
    half = _round_up(pl.cdiv(B, 2), 8)
    tm = max(8, min(block_m, half))
    b_pad = _round_up(B, tm)
    obs_p = obs if b_pad == B else jnp.zeros((b_pad, d_in), obs.dtype).at[:B].set(obs)

    ab = jnp.full((1, 1), action_bound, jnp.float32)   # SMEM scalar (no recompile on change)
    const = lambda i: (0, 0)                           # weights: same block every grid step

    cp_kwargs = dict(dimension_semantics=("parallel",))
    if tm > 2048:
        # v5e scoped-VMEM default is 16 MiB; big tiles need explicit headroom.
        cp_kwargs["vmem_limit_bytes"] = 32 * 1024 * 1024

    out = pl.pallas_call(
        _actor_kernel,
        out_shape=jax.ShapeDtypeStruct((b_pad, NUM_HEADS), jnp.float32),
        grid=(b_pad // tm,),
        in_specs=[
            pl.BlockSpec(memory_space=pltpu.MemorySpace.SMEM),       # action_bound (1,1)
            pl.BlockSpec(memory_space=pltpu.MemorySpace.SMEM),       # head biases  (1,2)
            pl.BlockSpec((tm, d_in), lambda i: (i, 0)),              # obs batch tile
            pl.BlockSpec((d_in, HIDDEN1), const),                    # W1 (padded, f32, VPU)
            pl.BlockSpec((1, HIDDEN1), const),                       # b1 (padded)
            pl.BlockSpec((HIDDEN1, HIDDEN2), const),                 # W2 (bf16, MXU)
            pl.BlockSpec((1, HIDDEN2), const),                       # b2
            pl.BlockSpec((NUM_HEADS, HIDDEN2), const),               # head weights [2,128]
        ],
        out_specs=pl.BlockSpec((tm, NUM_HEADS), lambda i: (i, 0)),
        compiler_params=pltpu.CompilerParams(**cp_kwargs),
    )(ab, packed["bh"], obs_p, packed["w1"], packed["b1"], packed["w2"],
      packed["b2"], packed["wh"])

    return out[:B, 0:1], out[:B, 1:2]


def init_params(key, innershape):
    """Deterministic synthetic init mirroring torch.nn.Linear shapes."""
    ks = jax.random.split(key, 8)

    def lin(kw, kb, fan_in, fan_out):
        bound = 1.0 / jnp.sqrt(jnp.float32(fan_in))
        w = jax.random.uniform(kw, (fan_in, fan_out), jnp.float32, -bound, bound)
        b = jax.random.uniform(kb, (1, fan_out), jnp.float32, -bound, bound)
        return w, b

    w1, b1 = lin(ks[0], ks[1], innershape, 64)
    w2, b2 = lin(ks[2], ks[3], 64, 128)
    wmu, bmu = lin(ks[4], ks[5], 128, 1)
    ws, bs = lin(ks[6], ks[7], 128, 1)
    return dict(w1=w1, b1=b1, w2=w2, b2=b2, wmu=wmu, bmu=bmu, ws=ws, bs=bs)


def actor_ref(obs, p, action_bound):
    h1 = jnp.maximum(obs @ p["w1"] + p["b1"], 0.0)
    h2 = jnp.maximum(h1 @ p["w2"] + p["b2"], 0.0)
    mean = jnp.tanh(h2 @ p["wmu"] + p["bmu"]) * action_bound
    sigma = jax.nn.softplus(h2 @ p["ws"] + p["bs"])
    return mean, sigma


if __name__ == "__main__":
    key = jax.random.PRNGKey(0)
    k_obs, k_par, k_obs2 = jax.random.split(key, 3)

    # Pendulum-v1: innershape=3 observations, outershape=1 action, bound=2.0
    B, INNERSHAPE, ACTION_BOUND = 8, 3, 2.0

    obs = jax.random.normal(k_obs, (B, INNERSHAPE), jnp.float32)
    params = init_params(k_par, INNERSHAPE)
    packed = pack_params(params)

    mean, sigma = actor_forward(obs, packed, ACTION_BOUND)
    jax.block_until_ready((mean, sigma))

    mean_r, sigma_r = actor_ref(obs, params, ACTION_BOUND)
    assert mean.shape == (B, 1) and sigma.shape == (B, 1)
    # bf16 W2 matmul -> loosened tolerance (deliberate accuracy/speed trade)
    assert jnp.allclose(mean, mean_r, atol=2e-2, rtol=2e-2), "mean mismatch"
    assert jnp.allclose(sigma, sigma_r, atol=2e-2, rtol=2e-2), "sigma mismatch"

    # Exercise the batch grid (>1 step) and the ragged-batch padding path.
    B2 = 20
    obs2 = jax.random.normal(k_obs2, (B2, INNERSHAPE), jnp.float32)
    mean2, sigma2 = actor_forward(obs2, packed, ACTION_BOUND, block_m=8)
    jax.block_until_ready((mean2, sigma2))
    mean2_r, sigma2_r = actor_ref(obs2, params, ACTION_BOUND)
    assert mean2.shape == (B2, 1) and sigma2.shape == (B2, 1)
    assert jnp.allclose(mean2, mean2_r, atol=2e-2, rtol=2e-2), "mean mismatch (gridded)"
    assert jnp.allclose(sigma2, sigma2_r, atol=2e-2, rtol=2e-2), "sigma mismatch (gridded)"

    print("KERNEL_OK")
</pallas_src>

<mosaic_0001>
module attributes {stable_mosaic.version = 11 : i64} {
  func.func @_actor_kernel(%arg0: i32, %arg1: memref<1x1xf32, #tpu.memory_space<smem>>, %arg2: memref<1x2xf32, #tpu.memory_space<smem>>, %arg3: memref<8x3xf32, #tpu.memory_space<vmem>>, %arg4: memref<3x128xf32, #tpu.memory_space<vmem>>, %arg5: memref<1x128xf32, #tpu.memory_space<vmem>>, %arg6: memref<128x128xbf16, #tpu.memory_space<vmem>>, %arg7: memref<1x128xf32, #tpu.memory_space<vmem>>, %arg8: memref<2x128xf32, #tpu.memory_space<vmem>>, %arg9: memref<8x2xf32, #tpu.memory_space<vmem>>) attributes {dimension_semantics = [#tpu.dimension_semantics<parallel>], iteration_bounds = array<i64: 1>, scalar_prefetch = 0 : i64, scratch_operands = 0 : i64, tpu.core_type = #tpu.core_type<tc>, window_params = [{transform_indices = @transform_0, window_bounds = array<i64: 1, 1>}, {transform_indices = @transform_1, window_bounds = array<i64: 1, 2>}, {transform_indices = @transform_2, window_bounds = array<i64: 8, 3>}, {pipeline_mode = #tpu.pipeline_mode<synchronous>, transform_indices = @transform_3, window_bounds = array<i64: 3, 128>}, {pipeline_mode = #tpu.pipeline_mode<synchronous>, transform_indices = @transform_4, window_bounds = array<i64: 1, 128>}, {pipeline_mode = #tpu.pipeline_mode<synchronous>, transform_indices = @transform_5, window_bounds = array<i64: 128, 128>}, {pipeline_mode = #tpu.pipeline_mode<synchronous>, transform_indices = @transform_6, window_bounds = array<i64: 1, 128>}, {pipeline_mode = #tpu.pipeline_mode<synchronous>, transform_indices = @transform_7, window_bounds = array<i64: 2, 128>}, {transform_indices = @transform_8, window_bounds = array<i64: 8, 2>}]} {
    %c0 = arith.constant 0 : index
    %c0_0 = arith.constant 0 : index
    %0 = vector.load %arg3[%c0, %c0_0] : memref<8x3xf32, #tpu.memory_space<vmem>>, vector<8x3xf32>
    %c0_1 = arith.constant 0 : index
    %c0_2 = arith.constant 0 : index
    %1 = vector.load %arg4[%c0_1, %c0_2] : memref<3x128xf32, #tpu.memory_space<vmem>>, vector<3x128xf32>
    %c0_3 = arith.constant 0 : index
    %c0_4 = arith.constant 0 : index
    %2 = vector.load %arg5[%c0_3, %c0_4] : memref<1x128xf32, #tpu.memory_space<vmem>>, vector<1x128xf32>
    %3 = vector.extract_strided_slice %0 {offsets = [0, 0], sizes = [8, 1], strides = [1, 1]} : vector<8x3xf32> to vector<8x1xf32>
    %4 = vector.extract_strided_slice %1 {offsets = [0, 0], sizes = [1, 128], strides = [1, 1]} : vector<3x128xf32> to vector<1x128xf32>
    %5 = vector.broadcast %3 : vector<8x1xf32> to vector<8x128xf32>
    %6 = vector.broadcast %4 : vector<1x128xf32> to vector<8x128xf32>
    %7 = arith.mulf %5, %6 : vector<8x128xf32>
    %8 = vector.broadcast %2 : vector<1x128xf32> to vector<8x128xf32>
    %9 = arith.addf %8, %7 : vector<8x128xf32>
    %10 = vector.extract_strided_slice %0 {offsets = [0, 1], sizes = [8, 1], strides = [1, 1]} : vector<8x3xf32> to vector<8x1xf32>
    %11 = vector.extract_strided_slice %1 {offsets = [1, 0], sizes = [1, 128], strides = [1, 1]} : vector<3x128xf32> to vector<1x128xf32>
    %12 = vector.broadcast %10 : vector<8x1xf32> to vector<8x128xf32>
    %13 = vector.broadcast %11 : vector<1x128xf32> to vector<8x128xf32>
    %14 = arith.mulf %12, %13 : vector<8x128xf32>
    %15 = arith.addf %9, %14 : vector<8x128xf32>
    %16 = vector.extract_strided_slice %0 {offsets = [0, 2], sizes = [8, 1], strides = [1, 1]} : vector<8x3xf32> to vector<8x1xf32>
    %17 = vector.extract_strided_slice %1 {offsets = [2, 0], sizes = [1, 128], strides = [1, 1]} : vector<3x128xf32> to vector<1x128xf32>
    %18 = vector.broadcast %16 : vector<8x1xf32> to vector<8x128xf32>
    %19 = vector.broadcast %17 : vector<1x128xf32> to vector<8x128xf32>
    %20 = arith.mulf %18, %19 : vector<8x128xf32>
    %21 = arith.addf %15, %20 : vector<8x128xf32>
    %cst = arith.constant 0.000000e+00 : f32
    %22 = vector.broadcast %cst : f32 to vector<8x128xf32>
    %23 = arith.maximumf %21, %22 : vector<8x128xf32>
    %24 = arith.truncf %23 : vector<8x128xf32> to vector<8x128xbf16>
    %c0_5 = arith.constant 0 : index
    %c0_6 = arith.constant 0 : index
    %25 = vector.load %arg6[%c0_5, %c0_6] : memref<128x128xbf16, #tpu.memory_space<vmem>>, vector<128x128xbf16>
    %cst_7 = arith.constant dense<0.000000e+00> : vector<8x128xf32>
    %26 = tpu.matmul %24, %25, %cst_7 {dimension_numbers = #tpu.dot_dimension_numbers<[1], [0], [0], [1], [0, 0, 1, 1], [], []>} : vector<8x128xbf16>, vector<128x128xbf16>, vector<8x128xf32> -> vector<8x128xf32>
    %c0_8 = arith.constant 0 : index
    %c0_9 = arith.constant 0 : index
    %27 = vector.load %arg7[%c0_8, %c0_9] : memref<1x128xf32, #tpu.memory_space<vmem>>, vector<1x128xf32>
    %28 = vector.broadcast %27 : vector<1x128xf32> to vector<8x128xf32>
    %29 = arith.addf %26, %28 : vector<8x128xf32>
    %cst_10 = arith.constant 0.000000e+00 : f32
    %30 = vector.broadcast %cst_10 : f32 to vector<8x128xf32>
    %31 = arith.maximumf %29, %30 : vector<8x128xf32>
    %c0_11 = arith.constant 0 : index
    %c0_12 = arith.constant 0 : index
    %32 = vector.load %arg8[%c0_11, %c0_12] : memref<2x128xf32, #tpu.memory_space<vmem>>, vector<2x128xf32>
    %33 = vector.extract_strided_slice %32 {offsets = [0, 0], sizes = [1, 128], strides = [1, 1]} : vector<2x128xf32> to vector<1x128xf32>
    %34 = vector.broadcast %33 : vector<1x128xf32> to vector<8x128xf32>
    %35 = arith.mulf %31, %34 : vector<8x128xf32>
    %cst_13 = arith.constant dense<0.000000e+00> : vector<8xf32>
    %36 = vector.multi_reduction <add>, %35, %cst_13 [1] : vector<8x128xf32> to vector<8xf32>
    %37 = vector.shape_cast %36 : vector<8xf32> to vector<8x1xf32>
    %c0_14 = arith.constant 0 : index
    %c0_15 = arith.constant 0 : index
    %38 = memref.load %arg2[%c0_14, %c0_15] : memref<1x2xf32, #tpu.memory_space<smem>>
    %39 = vector.broadcast %38 : f32 to vector<8x1xf32>
    %40 = arith.addf %37, %39 : vector<8x1xf32>
    %41 = vector.extract_strided_slice %32 {offsets = [1, 0], sizes = [1, 128], strides = [1, 1]} : vector<2x128xf32> to vector<1x128xf32>
    %42 = vector.broadcast %41 : vector<1x128xf32> to vector<8x128xf32>
    %43 = arith.mulf %31, %42 : vector<8x128xf32>
    %cst_16 = arith.constant dense<0.000000e+00> : vector<8xf32>
    %44 = vector.multi_reduction <add>, %43, %cst_16 [1] : vector<8x128xf32> to vector<8xf32>
    %45 = vector.shape_cast %44 : vector<8xf32> to vector<8x1xf32>
    %c0_17 = arith.constant 0 : index
    %c1 = arith.constant 1 : index
    %46 = memref.load %arg2[%c0_17, %c1] : memref<1x2xf32, #tpu.memory_space<smem>>
    %47 = vector.broadcast %46 : f32 to vector<8x1xf32>
    %48 = arith.addf %45, %47 : vector<8x1xf32>
    %c0_18 = arith.constant 0 : index
    %c0_19 = arith.constant 0 : index
    %49 = memref.load %arg1[%c0_18, %c0_19] : memref<1x1xf32, #tpu.memory_space<smem>>
    %50 = math.tanh %40 : vector<8x1xf32>
    %51 = vector.broadcast %49 : f32 to vector<8x1xf32>
    %52 = arith.mulf %50, %51 : vector<8x1xf32>
    %cst_20 = arith.constant 0.000000e+00 : f32
    %53 = vector.broadcast %cst_20 : f32 to vector<8x1xf32>
    %54 = arith.maximumf %48, %53 : vector<8x1xf32>
    %55 = math.absf %48 : vector<8x1xf32>
    %cst_21 = arith.constant 0.000000e+00 : f32
    %56 = vector.broadcast %cst_21 : f32 to vector<8x1xf32>
    %57 = arith.subf %56, %55 : vector<8x1xf32>
    %58 = math.exp %57 : vector<8x1xf32>
    %cst_22 = arith.constant 1.000000e+00 : f32
    %59 = vector.broadcast %cst_22 : f32 to vector<8x1xf32>
    %60 = arith.addf %59, %58 : vector<8x1xf32>
    %61 = math.log %60 : vector<8x1xf32>
    %62 = arith.addf %54, %61 : vector<8x1xf32>
    %63 = tpu.iota {dimensions = array<i32: 1>} : vector<8x2xi32>
    %c0_i32 = arith.constant 0 : i32
    %64 = vector.broadcast %c0_i32 : i32 to vector<8x2xi32>
    %65 = arith.cmpi eq, %63, %64 : vector<8x2xi32>
    %66 = vector.shape_cast %52 : vector<8x1xf32> to vector<8x1xf32>
    %67 = vector.broadcast %66 : vector<8x1xf32> to vector<8x2xf32>
    %68 = vector.shape_cast %62 : vector<8x1xf32> to vector<8x1xf32>
    %69 = vector.broadcast %68 : vector<8x1xf32> to vector<8x2xf32>
    %70 = arith.select %65, %67, %69 : vector<8x2xi1>, vector<8x2xf32>
    %c0_23 = arith.constant 0 : index
    %c0_24 = arith.constant 0 : index
    %71 = vector.load %arg9[%c0_23, %c0_24] : memref<8x2xf32, #tpu.memory_space<vmem>>, vector<8x2xf32>
    tpu.vector_store %arg9[%c0_23, %c0_24], %70 {strides = array<i32>} : memref<8x2xf32, #tpu.memory_space<vmem>>, vector<8x2xf32>,
    return
  }
  func.func @transform_0(%arg0: i32) -> (i32, i32) {
    %c0_i32 = arith.constant 0 : i32
    %c0_i32_0 = arith.constant 0 : i32
    %c0_i32_1 = arith.constant 0 : i32
    return %c0_i32, %c0_i32_0 : i32, i32
  }
  func.func @transform_1(%arg0: i32) -> (i32, i32) {
    %c0_i32 = arith.constant 0 : i32
    %c0_i32_0 = arith.constant 0 : i32
    %c0_i32_1 = arith.constant 0 : i32
    return %c0_i32, %c0_i32_0 : i32, i32
  }
  func.func @transform_2(%arg0: i32) -> (i32, i32) {
    %c0_i32 = arith.constant 0 : i32
    %c0_i32_0 = arith.constant 0 : i32
    return %arg0, %c0_i32 : i32, i32
  }
  func.func @transform_3(%arg0: i32) -> (i32, i32) {
    %c0_i32 = arith.constant 0 : i32
    %c0_i32_0 = arith.constant 0 : i32
    %c0_i32_1 = arith.constant 0 : i32
    return %c0_i32, %c0_i32_0 : i32, i32
  }
  func.func @transform_4(%arg0: i32) -> (i32, i32) {
    %c0_i32 = arith.constant 0 : i32
    %c0_i32_0 = arith.constant 0 : i32
    %c0_i32_1 = arith.constant 0 : i32
    return %c0_i32, %c0_i32_0 : i32, i32
  }
  func.func @transform_5(%arg0: i32) -> (i32, i32) {
    %c0_i32 = arith.constant 0 : i32
    %c0_i32_0 = arith.constant 0 : i32
    %c0_i32_1 = arith.constant 0 : i32
    return %c0_i32, %c0_i32_0 : i32, i32
  }
  func.func @transform_6(%arg0: i32) -> (i32, i32) {
    %c0_i32 = arith.constant 0 : i32
    %c0_i32_0 = arith.constant 0 : i32
    %c0_i32_1 = arith.constant 0 : i32
    return %c0_i32, %c0_i32_0 : i32, i32
  }
  func.func @transform_7(%arg0: i32) -> (i32, i32) {
    %c0_i32 = arith.constant 0 : i32
    %c0_i32_0 = arith.constant 0 : i32
    %c0_i32_1 = arith.constant 0 : i32
    return %c0_i32, %c0_i32_0 : i32, i32
  }
  func.func @transform_8(%arg0: i32) -> (i32, i32) {
    %c0_i32 = arith.constant 0 : i32
    %c0_i32_0 = arith.constant 0 : i32
    return %arg0, %c0_i32 : i32, i32
  }
}

</mosaic_0001>

<llo_original>
// kernel: tpu_custom_call.1
$region0: #{tpu_custom_call.1}
  #allocation0 [shape = 'u32[]', space=smem, size = 0x4, offset = 0x4, fixed_abs, tag = 'smem constant byte address 0x4 - core index']
  #allocation1 [shape = 'u32[144,128]{1,0:T(1,128)}', space=vmem, size = 0x12000, scoped, tag = 'internal scratch']
  #allocation2 [shape = 'f32[1,1]{1,0:T(1,128)S(6)}', space=smem, size = 0x200, scoped, tag = 'scoped memory for tpu_custom_call.1']
  %s0 = inlined_call_operand.<no memory space> [shape: f32[1,1], index: 0, kind: input, shape index: {}]
  %s1 = inlined_call_operand.vmem [shape: f32[1,2], index: 1, kind: input, shape index: {}]
  %s2 = inlined_call_operand.vmem [shape: f32[8,3], index: 2, kind: input, shape index: {}]
  %s3 = inlined_call_operand.vmem [shape: f32[3,128], index: 3, kind: input, shape index: {}]
  %s4 = inlined_call_operand.vmem [shape: f32[1,128], index: 4, kind: input, shape index: {}]
  %s5 = inlined_call_operand.hbm [shape: bf16[128,128], index: 5, kind: input, shape index: {}]
  %s6 = inlined_call_operand.vmem [shape: f32[1,128], index: 6, kind: input, shape index: {}]
  %s7 = inlined_call_operand.vmem [shape: f32[2,128], index: 7, kind: input, shape index: {}]
  %s8 = inlined_call_operand.vmem [shape: f32[8,2], index: 8, kind: output, shape index: {}]
  %s9 = sld [smem:[#allocation0]]
  $region50: #{tpu_custom_call.1} parent=0
    _
  %s11 = ssub.s32 1, %s9
  %s12 = scalar_select 0, %s11, %s9
  %13 = sst [smem:[#allocation2]] %s0
  $region1: #{tpu_custom_call.1} parent=0
    #allocation3 [shape = 'u8[512]{0}', space=smem, size = 0x200, scoped, tag = 'input window, operand 1, single buffered']
    #allocation4 [shape = 's32[1]{0}', space=sflag, size = 0x4, scoped, tag = 'scoped memory for tpu_custom_call.1']
    #allocation5 [shape = 's32[1]{0}', space=sflag, size = 0x4, scoped, tag = 'scoped memory for tpu_custom_call.1']
    #allocation6 [shape = 'u8[32768]{0}', space=vmem, size = 0x8000, scoped, tag = 'input window, operand 5, single buffered']
    %14 = vsyncpa [#allocation5], 0
    %15 = vsyncpa [#allocation4], 0
    // Predicated region
    $region2: #{tpu_custom_call.1} parent=1 // pred_check
      _
    $region3: #{tpu_custom_call.1} parent=1 // pred_check_branch
      %17 = sbr.rel (0) target = $region5
    $region4: #{tpu_custom_call.1} parent=1 // pred_region
      _
    $region5: #{tpu_custom_call.1} parent=1 // pred_fallthru
      _
    // Predicated region
    $region6: #{tpu_custom_call.1} parent=1 // pred_check
      _
    $region7: #{tpu_custom_call.1} parent=1 // pred_check_branch
      %19 = sbr.rel (0) target = $region9
    $region8: #{tpu_custom_call.1} parent=1 // pred_region
      %s21 = ssub.s32 16, 16
      %22 = vsyncadd [#allocation5], %s21
      %s24 = sshll.u32 %s1, 4
      %s25 = int_to_ptr.vmem [resolvable:$true] %s24
      %27 = dma.vmem_to_smem %s25, 16, [#allocation3], [#allocation5]
    $region9: #{tpu_custom_call.1} parent=1 // pred_fallthru
      _
    // Predicated region
    $region10: #{tpu_custom_call.1} parent=1 // pred_check
      _
    $region11: #{tpu_custom_call.1} parent=1 // pred_check_branch
      %29 = sbr.rel (0) target = $region13
    $region12: #{tpu_custom_call.1} parent=1 // pred_region
      _
    $region13: #{tpu_custom_call.1} parent=1 // pred_fallthru
      _
    // Predicated region
    $region14: #{tpu_custom_call.1} parent=1 // pred_check
      _
    $region15: #{tpu_custom_call.1} parent=1 // pred_check_branch
      %31 = sbr.rel (0) target = $region17
    $region16: #{tpu_custom_call.1} parent=1 // pred_region
      _
    $region17: #{tpu_custom_call.1} parent=1 // pred_fallthru
      _
    // Predicated region
    $region18: #{tpu_custom_call.1} parent=1 // pred_check
      _
    $region19: #{tpu_custom_call.1} parent=1 // pred_check_branch
      %33 = sbr.rel (0) target = $region21
    $region20: #{tpu_custom_call.1} parent=1 // pred_region
      _
    $region21: #{tpu_custom_call.1} parent=1 // pred_fallthru
      _
    // Predicated region
    $region22: #{tpu_custom_call.1} parent=1 // pred_check
      _
    $region23: #{tpu_custom_call.1} parent=1 // pred_check_branch
      %35 = sbr.rel (0) target = $region25
    $region24: #{tpu_custom_call.1} parent=1 // pred_region
      %s37 = ssub.s32 1024, 1024
      %38 = vsyncadd [#allocation4], %s37
      %s39 = sshll.u32 [#allocation6], 4
      %s40 = int_to_ptr.vmem [resolvable:$true] %s39
      %45 = dma.hbm_to_vmem [thread:$0]  %s5, 1024, %s40, [#allocation4], 64, 64, 4
    $region25: #{tpu_custom_call.1} parent=1 // pred_fallthru
      _
    // Predicated region
    $region26: #{tpu_custom_call.1} parent=1 // pred_check
      _
    $region27: #{tpu_custom_call.1} parent=1 // pred_check_branch
      %47 = sbr.rel (0) target = $region29
    $region28: #{tpu_custom_call.1} parent=1 // pred_region
      _
    $region29: #{tpu_custom_call.1} parent=1 // pred_fallthru
      _
    // Predicated region
    $region30: #{tpu_custom_call.1} parent=1 // pred_check
      _
    $region31: #{tpu_custom_call.1} parent=1 // pred_check_branch
      %49 = sbr.rel (0) target = $region33
    $region32: #{tpu_custom_call.1} parent=1 // pred_region
      _
    $region33: #{tpu_custom_call.1} parent=1 // pred_fallthru
      _
    // Predicated region
    $region34: #{tpu_custom_call.1} parent=1 // pred_check
      _
    $region35: #{tpu_custom_call.1} parent=1 // pred_check_branch
      %51 = sbr.rel (0) target = $region37
    $region36: #{tpu_custom_call.1} parent=1 // pred_region
      %52 = dma.done [#allocation5], 16
    $region37: #{tpu_custom_call.1} parent=1 // pred_fallthru
      _
    // Predicated region
    $region38: #{tpu_custom_call.1} parent=1 // pred_check
      _
    $region39: #{tpu_custom_call.1} parent=1 // pred_check_branch
      %54 = sbr.rel (0) target = $region41
    $region40: #{tpu_custom_call.1} parent=1 // pred_region
      %55 = dma.done [#allocation4], 1024
    $region41: #{tpu_custom_call.1} parent=1 // pred_fallthru
      _
    %56 = sfence
    %v58 = vld [vmem:[%s2] sm:$0xff]
    %v59 = vld [vmem:[%s3] sm:$0x7]
    %v60 = vld [vmem:[%s4] sm:$0x1]
    %62 = vset.pattern.permute.xlu0 0
    %63 = vperm.xlu0 %62, %v58
    %v64 = vpop.permute.xlu0 %63
    %v66 = vlaneseq
    %v67 = vshrl.u32 %v66, 7
    %v68 = vsub.s32 0, %v67
    %v69 = vrot.slane %v59, %v68
    %v70 = vmul.f32 %v64, %v69
    %v72 = vlaneseq
    %v73 = vshrl.u32 %v72, 7
    %v74 = vsub.s32 0, %v73
    %v75 = vrot.slane %v60, %v74
    %v77 = vadd.f32 %v75, %v70
    %78 = vset.pattern.permute.xlu0 1
    %79 = vperm.xlu0 %78, %v58
    %v80 = vpop.permute.xlu0 %79
    %v82 = vlaneseq
    %v83 = vshrl.u32 %v82, 7
    %v84 = vsub.s32 1, %v83
    %v85 = vrot.slane %v59, %v84
    %v86 = vmul.f32 %v80, %v85
    %v87 = vadd.f32 %v77, %v86
    %88 = vset.pattern.permute.xlu0 2
    %89 = vperm.xlu0 %88, %v58
    %v90 = vpop.permute.xlu0 %89
    %v92 = vlaneseq
    %v93 = vshrl.u32 %v92, 7
    %v94 = vsub.s32 2, %v93
    %v95 = vrot.slane %v59, %v94
    %v96 = vmul.f32 %v90, %v95
    %v97 = vadd.f32 %v87, %v96
    %v98 = vmax.f32 %v97, 0.0
    %v99 = vpack.c.bf16 %v98, %v98
    %v100 = vld [vmem:[#allocation6] sm:$0xf]
    %v101 = vld [vmem:[#allocation6 + $0x4] sm:$0xf]
    %v102 = vld [vmem:[#allocation6 + $0x8] sm:$0xf]
    %v103 = vld [vmem:[#allocation6 + $0xc] sm:$0xf]
    %v104 = vld [vmem:[#allocation6 + $0x10] sm:$0xf]
    %v105 = vld [vmem:[#allocation6 + $0x14] sm:$0xf]
    %v106 = vld [vmem:[#allocation6 + $0x18] sm:$0xf]
    %v107 = vld [vmem:[#allocation6 + $0x1c] sm:$0xf]
    %v108 = vld [vmem:[#allocation6 + $0x20] sm:$0xf]
    %v109 = vld [vmem:[#allocation6 + $0x24] sm:$0xf]
    %v110 = vld [vmem:[#allocation6 + $0x28] sm:$0xf]
    %v111 = vld [vmem:[#allocation6 + $0x2c] sm:$0xf]
    %v112 = vld [vmem:[#allocation6 + $0x30] sm:$0xf]
    %v113 = vld [vmem:[#allocation6 + $0x34] sm:$0xf]
    %v114 = vld [vmem:[#allocation6 + $0x38] sm:$0xf]
    %v115 = vld [vmem:[#allocation6 + $0x3c] sm:$0xf]
    %v116 = vld [vmem:[%s6] sm:$0x1]
    %v118 = vlaneseq
    %v119 = vshrl.u32 %v118, 7
    %v120 = vsub.s32 0, %v119
    %v121 = vrot.slane %v116, %v120
    %v139 = vunpack.c.l.b16 %v100
    %v140 = vunpack.c.l.b16 %v101
    %v141 = vunpack.c.l.b16 %v102
    %v142 = vunpack.c.l.b16 %v103
    %v143 = vunpack.c.l.b16 %v104
    %v144 = vunpack.c.l.b16 %v105
    %v145 = vunpack.c.l.b16 %v106
    %v146 = vunpack.c.l.b16 %v107
    %v147 = vunpack.c.l.b16 %v108
    %v148 = vunpack.c.l.b16 %v109
    %v149 = vunpack.c.l.b16 %v110
    %v150 = vunpack.c.l.b16 %v111
    %v151 = vunpack.c.l.b16 %v112
    %v152 = vunpack.c.l.b16 %v113
    %v153 = vunpack.c.l.b16 %v114
    %v154 = vunpack.c.l.b16 %v115
    %v155 = vpack.c.b16 %v140, %v139
    %v156 = vpack.c.b16 %v142, %v141
    %v157 = vpack.c.b16 %v144, %v143
    %v158 = vpack.c.b16 %v146, %v145
    %v159 = vpack.c.b16 %v148, %v147
    %v160 = vpack.c.b16 %v150, %v149
    %v161 = vpack.c.b16 %v152, %v151
    %v162 = vpack.c.b16 %v154, %v153
    %171 = vmatprep.subr.bf16.mxu0 0
    %172 = vmatpush1.bf16.msra.mxu0 %v162
    %173 = vmatprep.subr.bf16.mxu0 0
    %174 = vmatpush1.bf16.msra.mxu0 %v161
    %175 = vmatprep.subr.bf16.mxu0 0
    %176 = vmatpush1.bf16.msra.mxu0 %v160
    %177 = vmatprep.subr.bf16.mxu0 0
    %178 = vmatpush1.bf16.msra.mxu0 %v159
    %179 = vmatprep.subr.bf16.mxu0 0
    %180 = vmatpush1.bf16.msra.mxu0 %v158
    %181 = vmatprep.subr.bf16.mxu0 0
    %182 = vmatpush1.bf16.msra.mxu0 %v157
    %183 = vmatprep.subr.bf16.mxu0 0
    %184 = vmatpush1.bf16.msra.mxu0 %v156
    %185 = vmatprep.subr.bf16.mxu0 0
    %186 = vmatpush1.bf16.msra.mxu0 %v155
    %187 = vmatprep.subr.bf16.mxu0 0
    %188 = vmatpush2.bf16.msra.mxu0 0
    %189 = vmatprep.subr.bf16.mxu0 0
    %190 = vmatpush2.bf16.msra.mxu0 0
    %191 = vmatprep.subr.bf16.mxu0 0
    %192 = vmatpush2.bf16.msra.mxu0 0
    %193 = vmatprep.subr.bf16.mxu0 0
    %194 = vmatpush2.bf16.msra.mxu0 0
    %195 = vmatprep.subr.bf16.mxu0 0
    %196 = vmatpush2.bf16.msra.mxu0 0
    %197 = vmatprep.subr.bf16.mxu0 0
    %198 = vmatpush2.bf16.msra.mxu0 0
    %199 = vmatprep.subr.bf16.mxu0 0
    %200 = vmatpush2.bf16.msra.mxu0 0
    %201 = vmatprep.subr.bf16.mxu0 0
    %202 = vmatpush2.bf16.msra.mxu0 0
    %203 = vmatprep.mubr.bf16.mxu0 0
    %204 = vmatmul.mubr.bf16.gmra.mxu0 %v99
    %v205 = vpop.f32.mrf.mxu0
    %v206 = vadd.f32 %v121, %v205
    %v207 = vpop.f32.mrf.mxu0
    %v208 = vpop.f32.mrf.mxu0
    %v209 = vpop.f32.mrf.mxu0
    %210 = vdwg.mxu0
    %v211 = vmax.f32 %v206, 0.0
    %v212 = vld [vmem:[%s7] sm:$0x3]
    %v213 = vlaneseq
    %v214 = vshrl.u32 %v213, 7
    %v215 = vsub.s32 0, %v214
    %v216 = vrot.slane %v212, %v215
    %v217 = vmul.f32 %v211, %v216
    %218 = vadd.xlane.f32.xlu0 %v217
    %v219 = vpop.xlane.xlu0 %218
    %s220 = sld [smem:[#allocation3]]
    %v221 = vstv %s220
    %v222 = vadd.f32 %v219, %v221
    %v223 = vlaneseq
    %v224 = vshrl.u32 %v223, 7
    %v225 = vsub.s32 1, %v224
    %v226 = vrot.slane %v212, %v225
    %v227 = vmul.f32 %v211, %v226
    %228 = vadd.xlane.f32.xlu0 %v227
    %v229 = vpop.xlane.xlu0 %228
    %s230 = sld [smem:[#allocation3 + $0x1]]
    %v231 = vstv %s230
    %v232 = vadd.f32 %v229, %v231
    %s233 = sld [smem:[#allocation2]]
    %v234 = vtanh.pop %v222
    %v235 = vstv %s233
    %v236 = vmul.f32 %v234, %v235
    %v237 = vmax.f32 %v232, 0.0
    %v238 = vand.u32 2147483647, %v232
    %v239 = vsub.f32 0.0, %v238
    %v240 = vmul.f32 %v239, 1.442695
    %v241 = vpow.pop %v240
    %v242 = vadd.f32 %v241, 1.0
    %v243 = vlog2.pop %v242
    %v244 = vmul.f32 %v243, 0.6931472
    %v245 = vadd.f32 %v237, %v244
    %v246 = vlaneseq
    %v247 = vand.u32 %v246, 127
    %vm248 = vcmp.eq.s32.totalorder %v247, 0
    %v249 = vsel %vm248, %v236, %v245
    %vm250 = vcmask 15360
    %251 = vst.msk [vmem:[%s8] sm:$0xff] %vm250, %v249
    // Predicated region
    $region42: #{tpu_custom_call.1} parent=1 // pred_check
      _
    $region43: #{tpu_custom_call.1} parent=1 // pred_check_branch
      %253 = sbr.rel (0) target = $region45
    $region44: #{tpu_custom_call.1} parent=1 // pred_region
      _
    $region45: #{tpu_custom_call.1} parent=1 // pred_fallthru
      _
    // Predicated region
    $region46: #{tpu_custom_call.1} parent=1 // pred_check
      _
    $region47: #{tpu_custom_call.1} parent=1 // pred_check_branch
      %255 = sbr.rel (0) target = $region49
    $region48: #{tpu_custom_call.1} parent=1 // pred_region
      _
    $region49: #{tpu_custom_call.1} parent=1 // pred_fallthru
      _
    %256 = vsyncpa [#allocation4], 1
    %257 = vsyncpa [#allocation5], 1

</llo_original>
